<compile_context>
chip_gen: v7x
topology: tpu7x:2x2x1
jax: 0.10.0
libtpu: 0.0.40
codegen_flags: <defaults>
</compile_context>

<pallas_src>
import functools

import jax
import jax.numpy as jnp
from jax.experimental import pallas as pl
from jax.experimental.pallas import tpu as pltpu


_LANE = 128          # lane width: hidden/output features padded to this
_SUBLANE_F32 = 8     # f32 sublane tile
_SUBLANE_BF16 = 16   # bf16 sublane packing (2 rows per 32-bit sublane)


def _round_up(n, m):
    return ((n + m - 1) // m) * m


def init_params(key, input_size=8, hidden_size=64, output_size=4):
    """Xavier-uniform weights in [in, out] layout, zero biases (matches _init_weights)."""
    def xavier(k, fan_in, fan_out):
        bound = (6.0 / (fan_in + fan_out)) ** 0.5
        return jax.random.uniform(k, (fan_in, fan_out), jnp.float32, -bound, bound)

    k1, k2, k3 = jax.random.split(key, 3)
    w1 = xavier(k1, input_size, hidden_size)
    b1 = jnp.zeros((hidden_size,), jnp.float32)
    w2 = xavier(k2, hidden_size, hidden_size)
    b2 = jnp.zeros((hidden_size,), jnp.float32)
    w3 = xavier(k3, hidden_size, output_size)
    b3 = jnp.zeros((output_size,), jnp.float32)
    return (w1, b1, w2, b2, w3, b3)


def _layout(input_size, hidden_size, output_size):
    """Static packing layout shared by prepare_params() and the forward pass."""
    in_rows = _round_up(input_size, _SUBLANE_BF16)              # bf16-tile aligned
    lane = _round_up(max(hidden_size, output_size), _LANE)      # 128 for defaults
    o_w1 = 0
    o_w2 = in_rows                                              # multiple of 16
    o_w3 = in_rows + lane                                       # multiple of 16
    w_rows = in_rows + 2 * lane
    # biases: one per 8-row f32 block so every slice start is sublane-aligned
    b_rows = 3 * _SUBLANE_F32
    return in_rows, lane, (o_w1, o_w2, o_w3), w_rows, b_rows


def prepare_params(params, input_size=8, hidden_size=64, output_size=4):
    """Pack weights (bf16) and biases (f32) once per parameter update.

    Zero padding keeps the math exact: padded hidden lanes stay 0 through the
    bias-add/ReLU, and padded output lanes are never written back.
    """
    w1, b1, w2, b2, w3, b3 = params
    in_rows, lane, (o_w1, o_w2, o_w3), w_rows, b_rows = _layout(
        input_size, hidden_size, output_size)

    wbuf = jnp.zeros((w_rows, lane), jnp.bfloat16)
    wbuf = wbuf.at[o_w1:o_w1 + input_size, :hidden_size].set(w1.astype(jnp.bfloat16))
    wbuf = wbuf.at[o_w2:o_w2 + hidden_size, :hidden_size].set(w2.astype(jnp.bfloat16))
    wbuf = wbuf.at[o_w3:o_w3 + hidden_size, :output_size].set(w3.astype(jnp.bfloat16))

    bbuf = jnp.zeros((b_rows, lane), jnp.float32)
    bbuf = bbuf.at[0, :hidden_size].set(b1.reshape(-1).astype(jnp.float32))
    bbuf = bbuf.at[8, :hidden_size].set(b2.reshape(-1).astype(jnp.float32))
    bbuf = bbuf.at[16, :output_size].set(b3.reshape(-1).astype(jnp.float32))

    return wbuf, bbuf


def _make_mlp_kernel(in_rows, lane, offsets, output_size):
    o_w1, o_w2, o_w3 = offsets

    def kernel(x_ref, w_ref, b_ref, o_ref):
        x = x_ref[...]                                   # [tb, in_rows] bf16

        w1 = w_ref[o_w1:o_w1 + in_rows, :]               # [in_rows, lane] bf16
        w2 = w_ref[o_w2:o_w2 + lane, :]                  # [lane, lane]    bf16
        w3 = w_ref[o_w3:o_w3 + lane, :]                  # [lane, lane]    bf16
        b1 = b_ref[0:1, :]                               # [1, lane] f32
        b2 = b_ref[8:9, :]
        b3 = b_ref[16:17, :]

        h1 = jnp.dot(x, w1, preferred_element_type=jnp.float32) + b1
        h1 = jnp.maximum(h1, 0.0).astype(jnp.bfloat16)
        h2 = jnp.dot(h1, w2, preferred_element_type=jnp.float32) + b2
        h2 = jnp.maximum(h2, 0.0).astype(jnp.bfloat16)
        out = jnp.dot(h2, w3, preferred_element_type=jnp.float32) + b3
        # Narrow writeback: only the real output lanes leave the kernel.
        o_ref[...] = out[:, :output_size].astype(o_ref.dtype)

    return kernel


def _pick_batch_tile(batch, max_batch_tile):
    """Small batch -> one step; large batch -> >=2 steps (v7x megacore), capped."""
    b16 = _round_up(max(batch, 1), _SUBLANE_BF16)
    if b16 <= 1024:
        return b16
    half = _round_up((b16 + 1) // 2, _SUBLANE_BF16)
    return min(max_batch_tile, half)


def simple_snake_dqn_forward(x, wbuf, bbuf, *, input_size=8, hidden_size=64,
                             output_size=4, max_batch_tile=2048):
    """Pallas forward pass. x: [B, input_size] -> [B, output_size] float32."""
    B = x.shape[0]
    in_rows, lane, offsets, w_rows, b_rows = _layout(
        input_size, hidden_size, output_size)
    assert wbuf.shape == (w_rows, lane) and bbuf.shape == (b_rows, lane)

    tb = _pick_batch_tile(B, max_batch_tile)
    bp = _round_up(B, tb)

    # Tiny pad: batch rows to the tile multiple, features to the bf16-aligned
    # contraction width (16 cols bf16 = 32 B/row, same traffic as 8 cols f32).
    xp = jnp.pad(x.astype(jnp.bfloat16),
                 ((0, bp - B), (0, in_rows - input_size)))

    kernel = _make_mlp_kernel(in_rows, lane, offsets, output_size)

    out = pl.pallas_call(
        kernel,
        out_shape=jax.ShapeDtypeStruct((bp, output_size), jnp.float32),
        grid=(bp // tb,),
        in_specs=[
            pl.BlockSpec((tb, in_rows), lambda i: (i, 0)),     # batch-tiled x
            pl.BlockSpec((w_rows, lane), lambda i: (0, 0)),    # weights resident
            pl.BlockSpec((b_rows, lane), lambda i: (0, 0)),    # biases resident
        ],
        out_specs=pl.BlockSpec((tb, output_size), lambda i: (i, 0)),
        compiler_params=pltpu.CompilerParams(
            dimension_semantics=("parallel",)),
    )(xp, wbuf, bbuf)

    return out[:B]


def _reference_forward(x, params):
    """Pure-JAX f32 reference (PyTorch semantics)."""
    w1, b1, w2, b2, w3, b3 = params
    h1 = jnp.maximum(x @ w1 + b1, 0.0)
    h2 = jnp.maximum(h1 @ w2 + b2, 0.0)
    return h2 @ w3 + b3


def _reference_forward_bf16(x, params):
    """Reference emulating the kernel's bf16-input / f32-accumulate numerics."""
    w1, b1, w2, b2, w3, b3 = params
    bf16, f32 = jnp.bfloat16, jnp.float32
    h1 = jnp.dot(x.astype(bf16), w1.astype(bf16), preferred_element_type=f32) + b1
    h1 = jnp.maximum(h1, 0.0).astype(bf16)
    h2 = jnp.dot(h1, w2.astype(bf16), preferred_element_type=f32) + b2
    h2 = jnp.maximum(h2, 0.0).astype(bf16)
    return jnp.dot(h2, w3.astype(bf16), preferred_element_type=f32) + b3


if __name__ == "__main__":
    key = jax.random.PRNGKey(0)
    k_params, k_x1, k_x2 = jax.random.split(key, 3)

    input_size, hidden_size, output_size = 8, 64, 4
    params = init_params(k_params, input_size, hidden_size, output_size)

    # Pack once (per parameter update), outside the forward path.
    wbuf, bbuf = prepare_params(params, input_size, hidden_size, output_size)

    fwd = jax.jit(functools.partial(
        simple_snake_dqn_forward,
        input_size=input_size, hidden_size=hidden_size, output_size=output_size))

    # Small batch (single-state / tiny-batch inference path).
    x_small = jax.random.normal(k_x1, (2, input_size), jnp.float32)
    out_small = jax.block_until_ready(fwd(x_small, wbuf, bbuf))
    assert out_small.shape == (2, output_size)
    ref_small_bf16 = _reference_forward_bf16(x_small, params)
    ref_small_f32 = _reference_forward(x_small, params)
    assert jnp.allclose(out_small, ref_small_bf16, atol=1e-3, rtol=1e-3), \
        "small-batch mismatch vs bf16-emulated reference"
    assert jnp.allclose(out_small, ref_small_f32, atol=5e-2, rtol=5e-2), \
        "small-batch mismatch vs f32 reference"

    # Replay-buffer-sized batch: 2 grid steps of 2048 rows -> both v7x
    # TensorCores get work; only 2 steps of overhead on single-TC v5e/v6e.
    x_big = jax.random.normal(k_x2, (4096, input_size), jnp.float32)
    out_big = jax.block_until_ready(fwd(x_big, wbuf, bbuf))
    assert out_big.shape == (4096, output_size)
    ref_big_bf16 = _reference_forward_bf16(x_big, params)
    ref_big_f32 = _reference_forward(x_big, params)
    assert jnp.allclose(out_big, ref_big_bf16, atol=1e-3, rtol=1e-3), \
        "large-batch mismatch vs bf16-emulated reference"
    assert jnp.allclose(out_big, ref_big_f32, atol=5e-2, rtol=5e-2), \
        "large-batch mismatch vs f32 reference"

    print("KERNEL_OK")
</pallas_src>

<mosaic_0001>
module attributes {stable_mosaic.version = 11 : i64} {
  func.func @kernel(%arg0: i32, %arg1: memref<16x16xbf16, #tpu.memory_space<vmem>>, %arg2: memref<272x128xbf16, #tpu.memory_space<vmem>>, %arg3: memref<24x128xf32, #tpu.memory_space<vmem>>, %arg4: memref<16x4xf32, #tpu.memory_space<vmem>>) attributes {dimension_semantics = [#tpu.dimension_semantics<parallel>], iteration_bounds = array<i64: 1>, scalar_prefetch = 0 : i64, scratch_operands = 0 : i64, tpu.core_type = #tpu.core_type<tc>, window_params = [{transform_indices = @transform_0, window_bounds = array<i64: 16, 16>}, {pipeline_mode = #tpu.pipeline_mode<synchronous>, transform_indices = @transform_1, window_bounds = array<i64: 272, 128>}, {pipeline_mode = #tpu.pipeline_mode<synchronous>, transform_indices = @transform_2, window_bounds = array<i64: 24, 128>}, {transform_indices = @transform_3, window_bounds = array<i64: 16, 4>}]} {
    %c0 = arith.constant 0 : index
    %c0_0 = arith.constant 0 : index
    %0 = vector.load %arg1[%c0, %c0_0] : memref<16x16xbf16, #tpu.memory_space<vmem>>, vector<16x16xbf16>
    %c0_1 = arith.constant 0 : index
    %c0_2 = arith.constant 0 : index
    %1 = vector.load %arg2[%c0_1, %c0_2] : memref<272x128xbf16, #tpu.memory_space<vmem>>, vector<16x128xbf16>
    %c16 = arith.constant 16 : index
    %c0_3 = arith.constant 0 : index
    %2 = vector.load %arg2[%c16, %c0_3] : memref<272x128xbf16, #tpu.memory_space<vmem>>, vector<128x128xbf16>
    %c144 = arith.constant 144 : index
    %c0_4 = arith.constant 0 : index
    %3 = vector.load %arg2[%c144, %c0_4] : memref<272x128xbf16, #tpu.memory_space<vmem>>, vector<128x128xbf16>
    %c0_5 = arith.constant 0 : index
    %c0_6 = arith.constant 0 : index
    %4 = vector.load %arg3[%c0_5, %c0_6] : memref<24x128xf32, #tpu.memory_space<vmem>>, vector<1x128xf32>
    %c8 = arith.constant 8 : index
    %c0_7 = arith.constant 0 : index
    %5 = vector.load %arg3[%c8, %c0_7] : memref<24x128xf32, #tpu.memory_space<vmem>>, vector<1x128xf32>
    %c16_8 = arith.constant 16 : index
    %c0_9 = arith.constant 0 : index
    %6 = vector.load %arg3[%c16_8, %c0_9] : memref<24x128xf32, #tpu.memory_space<vmem>>, vector<1x128xf32>
    %cst = arith.constant dense<0.000000e+00> : vector<16x128xf32>
    %7 = tpu.matmul %0, %1, %cst {dimension_numbers = #tpu.dot_dimension_numbers<[1], [0], [0], [1], [0, 0, 1, 1], [], []>} : vector<16x16xbf16>, vector<16x128xbf16>, vector<16x128xf32> -> vector<16x128xf32>
    %8 = vector.broadcast %4 : vector<1x128xf32> to vector<16x128xf32>
    %9 = arith.addf %7, %8 : vector<16x128xf32>
    %cst_10 = arith.constant 0.000000e+00 : f32
    %10 = vector.broadcast %cst_10 : f32 to vector<16x128xf32>
    %11 = arith.maximumf %9, %10 : vector<16x128xf32>
    %12 = arith.truncf %11 : vector<16x128xf32> to vector<16x128xbf16>
    %cst_11 = arith.constant dense<0.000000e+00> : vector<16x128xf32>
    %13 = tpu.matmul %12, %2, %cst_11 {dimension_numbers = #tpu.dot_dimension_numbers<[1], [0], [0], [1], [0, 0, 1, 1], [], []>} : vector<16x128xbf16>, vector<128x128xbf16>, vector<16x128xf32> -> vector<16x128xf32>
    %14 = vector.broadcast %5 : vector<1x128xf32> to vector<16x128xf32>
    %15 = arith.addf %13, %14 : vector<16x128xf32>
    %cst_12 = arith.constant 0.000000e+00 : f32
    %16 = vector.broadcast %cst_12 : f32 to vector<16x128xf32>
    %17 = arith.maximumf %15, %16 : vector<16x128xf32>
    %18 = arith.truncf %17 : vector<16x128xf32> to vector<16x128xbf16>
    %cst_13 = arith.constant dense<0.000000e+00> : vector<16x128xf32>
    %19 = tpu.matmul %18, %3, %cst_13 {dimension_numbers = #tpu.dot_dimension_numbers<[1], [0], [0], [1], [0, 0, 1, 1], [], []>} : vector<16x128xbf16>, vector<128x128xbf16>, vector<16x128xf32> -> vector<16x128xf32>
    %20 = vector.broadcast %6 : vector<1x128xf32> to vector<16x128xf32>
    %21 = arith.addf %19, %20 : vector<16x128xf32>
    %22 = vector.extract_strided_slice %21 {offsets = [0, 0], sizes = [16, 4], strides = [1, 1]} : vector<16x128xf32> to vector<16x4xf32>
    %c0_14 = arith.constant 0 : index
    %c0_15 = arith.constant 0 : index
    %23 = vector.load %arg4[%c0_14, %c0_15] : memref<16x4xf32, #tpu.memory_space<vmem>>, vector<16x4xf32>
    tpu.vector_store %arg4[%c0_14, %c0_15], %22 {strides = array<i32>} : memref<16x4xf32, #tpu.memory_space<vmem>>, vector<16x4xf32>,
    return
  }
  func.func @transform_0(%arg0: i32) -> (i32, i32) {
    %c0_i32 = arith.constant 0 : i32
    %c0_i32_0 = arith.constant 0 : i32
    return %arg0, %c0_i32 : i32, i32
  }
  func.func @transform_1(%arg0: i32) -> (i32, i32) {
    %c0_i32 = arith.constant 0 : i32
    %c0_i32_0 = arith.constant 0 : i32
    %c0_i32_1 = arith.constant 0 : i32
    return %c0_i32, %c0_i32_0 : i32, i32
  }
  func.func @transform_2(%arg0: i32) -> (i32, i32) {
    %c0_i32 = arith.constant 0 : i32
    %c0_i32_0 = arith.constant 0 : i32
    %c0_i32_1 = arith.constant 0 : i32
    return %c0_i32, %c0_i32_0 : i32, i32
  }
  func.func @transform_3(%arg0: i32) -> (i32, i32) {
    %c0_i32 = arith.constant 0 : i32
    %c0_i32_0 = arith.constant 0 : i32
    return %arg0, %c0_i32 : i32, i32
  }
}

</mosaic_0001>

<llo_original>
// kernel: simple_snake_dqn_forward.1
$region0: #{simple_snake_dqn_forward.1}
  #allocation0 [shape = 'u32[]', space=smem, size = 0x4, offset = 0x4, fixed_abs, tag = 'smem constant byte address 0x4 - core index']
  #allocation1 [shape = 'u32[144,128]{1,0:T(1,128)}', space=vmem, size = 0x12000, scoped, tag = 'internal scratch']
  %s0 = inlined_call_operand.vmem [shape: bf16[16,16], index: 0, kind: input, shape index: {}]
  %s1 = inlined_call_operand.hbm [shape: bf16[272,128], index: 1, kind: input, shape index: {}]
  %s2 = inlined_call_operand.hbm [shape: f32[24,128], index: 2, kind: input, shape index: {}]
  %s3 = inlined_call_operand.vmem [shape: f32[16,4], index: 3, kind: output, shape index: {}]
  %s4 = sld [smem:[#allocation0]]
  $region30: #{simple_snake_dqn_forward.1} parent=0
    _
  %s6 = ssub.s32 1, %s4
  %s7 = scalar_select 0, %s6, %s4
  $region1: #{simple_snake_dqn_forward.1} parent=0
    #allocation2 [shape = 'u8[69632]{0}', space=vmem, size = 0x11000, scoped, tag = 'input window, operand 1, single buffered']
    #allocation3 [shape = 's32[1]{0}', space=sflag, size = 0x4, scoped, tag = 'scoped memory for simple_snake_dqn_forward.1']
    #allocation4 [shape = 'u8[12288]{0}', space=vmem, size = 0x3000, scoped, tag = 'input window, operand 2, single buffered']
    #allocation5 [shape = 's32[1]{0}', space=sflag, size = 0x4, scoped, tag = 'scoped memory for simple_snake_dqn_forward.1']
    %8 = vsyncpa [#allocation3], 0
    %9 = vsyncpa [#allocation5], 0
    // Predicated region
    $region2: #{simple_snake_dqn_forward.1} parent=1 // pred_check
      _
    $region3: #{simple_snake_dqn_forward.1} parent=1 // pred_check_branch
      %11 = sbr.rel (0) target = $region5
    $region4: #{simple_snake_dqn_forward.1} parent=1 // pred_region
      _
    $region5: #{simple_snake_dqn_forward.1} parent=1 // pred_fallthru
      _
    // Predicated region
    $region6: #{simple_snake_dqn_forward.1} parent=1 // pred_check
      _
    $region7: #{simple_snake_dqn_forward.1} parent=1 // pred_check_branch
      %13 = sbr.rel (0) target = $region9
    $region8: #{simple_snake_dqn_forward.1} parent=1 // pred_region
      %s15 = ssub.s32 2176, 2176
      %16 = vsyncadd [#allocation3], %s15
      %s17 = sshll.u32 [#allocation2], 4
      %s18 = int_to_ptr.vmem [resolvable:$true] %s17
      %23 = dma.hbm_to_vmem [thread:$0]  %s1, 2176, %s18, [#allocation3], 64, 64, 4
    $region9: #{simple_snake_dqn_forward.1} parent=1 // pred_fallthru
      _
    // Predicated region
    $region10: #{simple_snake_dqn_forward.1} parent=1 // pred_check
      _
    $region11: #{simple_snake_dqn_forward.1} parent=1 // pred_check_branch
      %25 = sbr.rel (0) target = $region13
    $region12: #{simple_snake_dqn_forward.1} parent=1 // pred_region
      %s27 = ssub.s32 384, 384
      %28 = vsyncadd [#allocation5], %s27
      %s29 = sshll.u32 [#allocation4], 4
      %s30 = int_to_ptr.vmem [resolvable:$true] %s29
      %35 = dma.hbm_to_vmem [thread:$0]  %s2, 384, %s30, [#allocation5], 128, 128, 8
    $region13: #{simple_snake_dqn_forward.1} parent=1 // pred_fallthru
      _
    // Predicated region
    $region14: #{simple_snake_dqn_forward.1} parent=1 // pred_check
      _
    $region15: #{simple_snake_dqn_forward.1} parent=1 // pred_check_branch
      %37 = sbr.rel (0) target = $region17
    $region16: #{simple_snake_dqn_forward.1} parent=1 // pred_region
      %38 = dma.done [#allocation3], 2176
    $region17: #{simple_snake_dqn_forward.1} parent=1 // pred_fallthru
      _
    // Predicated region
    $region18: #{simple_snake_dqn_forward.1} parent=1 // pred_check
      _
    $region19: #{simple_snake_dqn_forward.1} parent=1 // pred_check_branch
      %40 = sbr.rel (0) target = $region21
    $region20: #{simple_snake_dqn_forward.1} parent=1 // pred_region
      %41 = dma.done [#allocation5], 384
    $region21: #{simple_snake_dqn_forward.1} parent=1 // pred_fallthru
      _
    %v43 = vld [vmem:[%s0] sm:$0xf]
    %v44 = vld [vmem:[%s0 + $0x4] sm:$0xf]
    %v45 = vld [vmem:[#allocation2] sm:$0xf]
    %v46 = vld [vmem:[#allocation2 + $0x4] sm:$0xf]
    %v47 = vld [vmem:[#allocation2 + $0x8] sm:$0xf]
    %v48 = vld [vmem:[#allocation2 + $0xc] sm:$0xf]
    %v49 = vld [vmem:[#allocation2 + $0x10] sm:$0xf]
    %v50 = vld [vmem:[#allocation2 + $0x14] sm:$0xf]
    %v51 = vld [vmem:[#allocation2 + $0x18] sm:$0xf]
    %v52 = vld [vmem:[#allocation2 + $0x1c] sm:$0xf]
    %v53 = vld [vmem:[#allocation2 + $0x20] sm:$0xf]
    %v54 = vld [vmem:[#allocation2 + $0x24] sm:$0xf]
    %v55 = vld [vmem:[#allocation2 + $0x28] sm:$0xf]
    %v56 = vld [vmem:[#allocation2 + $0x2c] sm:$0xf]
    %v57 = vld [vmem:[#allocation2 + $0x30] sm:$0xf]
    %v58 = vld [vmem:[#allocation2 + $0x34] sm:$0xf]
    %v59 = vld [vmem:[#allocation2 + $0x38] sm:$0xf]
    %v60 = vld [vmem:[#allocation2 + $0x3c] sm:$0xf]
    %v61 = vld [vmem:[#allocation2 + $0x40] sm:$0xf]
    %v62 = vld [vmem:[#allocation2 + $0x44] sm:$0xf]
    %v63 = vld [vmem:[#allocation2 + $0x48] sm:$0xf]
    %v64 = vld [vmem:[#allocation2 + $0x4c] sm:$0xf]
    %v65 = vld [vmem:[#allocation2 + $0x50] sm:$0xf]
    %v66 = vld [vmem:[#allocation2 + $0x54] sm:$0xf]
    %v67 = vld [vmem:[#allocation2 + $0x58] sm:$0xf]
    %v68 = vld [vmem:[#allocation2 + $0x5c] sm:$0xf]
    %v69 = vld [vmem:[#allocation2 + $0x60] sm:$0xf]
    %v70 = vld [vmem:[#allocation2 + $0x64] sm:$0xf]
    %v71 = vld [vmem:[#allocation2 + $0x68] sm:$0xf]
    %v72 = vld [vmem:[#allocation2 + $0x6c] sm:$0xf]
    %v73 = vld [vmem:[#allocation2 + $0x70] sm:$0xf]
    %v74 = vld [vmem:[#allocation2 + $0x74] sm:$0xf]
    %v75 = vld [vmem:[#allocation2 + $0x78] sm:$0xf]
    %v76 = vld [vmem:[#allocation2 + $0x7c] sm:$0xf]
    %v77 = vld [vmem:[#allocation2 + $0x80] sm:$0xf]
    %v78 = vld [vmem:[#allocation2 + $0x84] sm:$0xf]
    %v79 = vld [vmem:[#allocation4] sm:$0x1]
    %v80 = vld [vmem:[#allocation4 + $0x8] sm:$0x1]
    %v81 = vld [vmem:[#allocation4 + $0x10] sm:$0x1]
    %v82 = vlaneseq
    %v83 = vshrl.u32 %v82, 7
    %v84 = vsub.s32 0, %v83
    %v85 = vrot.slane %v79, %v84
    %v88 = vunpack.c.l.b16 %v43
    %v89 = vunpack.c.l.b16 %v44
    %v90 = vpack.c.b16 %v89, %v88
    %v93 = vunpack.c.l.b16 %v45
    %v94 = vunpack.c.l.b16 %v46
    %v95 = vpack.c.b16 %v94, %v93
    %vm97 = vcmask 130048
    %v99 = vsel %vm97, %v90, 0
    %101 = vmatprep.subr.bf16.mxu0 0
    %102 = vmatpush1.bf16.msra.mxu0 %v95
    %103 = vmatprep.subr.bf16.mxu0 0
    %104 = vmatpush1.bf16.msra.mxu0 0
    %105 = vmatprep.subr.bf16.mxu0 0
    %106 = vmatpush1.bf16.msra.mxu0 0
    %107 = vmatprep.subr.bf16.mxu0 0
    %108 = vmatpush1.bf16.msra.mxu0 0
    %109 = vmatprep.subr.bf16.mxu0 0
    %110 = vmatpush1.bf16.msra.mxu0 0
    %111 = vmatprep.subr.bf16.mxu0 0
    %112 = vmatpush1.bf16.msra.mxu0 0
    %113 = vmatprep.subr.bf16.mxu0 0
    %114 = vmatpush1.bf16.msra.mxu0 0
    %115 = vmatprep.subr.bf16.mxu0 0
    %116 = vmatpush1.bf16.msra.mxu0 0
    %117 = vmatprep.subr.bf16.mxu0 0
    %118 = vmatpush1.bf16.msra.mxu0 0
    %119 = vmatprep.subr.bf16.mxu0 0
    %120 = vmatpush1.bf16.msra.mxu0 0
    %121 = vmatprep.subr.bf16.mxu0 0
    %122 = vmatpush1.bf16.msra.mxu0 0
    %123 = vmatprep.subr.bf16.mxu0 0
    %124 = vmatpush1.bf16.msra.mxu0 0
    %125 = vmatprep.subr.bf16.mxu0 0
    %126 = vmatpush1.bf16.msra.mxu0 0
    %127 = vmatprep.subr.bf16.mxu0 0
    %128 = vmatpush1.bf16.msra.mxu0 0
    %129 = vmatprep.subr.bf16.mxu0 0
    %130 = vmatpush1.bf16.msra.mxu0 0
    %131 = vmatprep.subr.bf16.mxu0 0
    %132 = vmatpush1.bf16.msra.mxu0 0
    %133 = vmatprep.mubr.bf16.mxu0 0
    %134 = vmatmul.mubr.bf16.gmra.mrb[0].mxu0 %v99
    %v135 = vpop.f32.mrb[0].mxu0
    %v136 = vadd.f32 %v85, %v135
    %v137 = vpop.f32.mrb[0].mxu0
    %v138 = vpop.f32.mrb[0].mxu0
    %v139 = vadd.f32 %v85, %v138
    %v140 = vpop.f32.mrb[0].mxu0
    %141 = vdwg.mxu0
    %v142 = vmax.f32 %v136, 0.0
    %v143 = vmax.f32 %v139, 0.0
    %v144 = vpack.c.bf16 %v143, %v142
    %v145 = vlaneseq
    %v146 = vshrl.u32 %v145, 7
    %v147 = vsub.s32 0, %v146
    %v148 = vrot.slane %v80, %v147
    %v165 = vunpack.c.l.b16 %v47
    %v166 = vunpack.c.l.b16 %v48
    %v167 = vunpack.c.l.b16 %v49
    %v168 = vunpack.c.l.b16 %v50
    %v169 = vunpack.c.l.b16 %v51
    %v170 = vunpack.c.l.b16 %v52
    %v171 = vunpack.c.l.b16 %v53
    %v172 = vunpack.c.l.b16 %v54
    %v173 = vunpack.c.l.b16 %v55
    %v174 = vunpack.c.l.b16 %v56
    %v175 = vunpack.c.l.b16 %v57
    %v176 = vunpack.c.l.b16 %v58
    %v177 = vunpack.c.l.b16 %v59
    %v178 = vunpack.c.l.b16 %v60
    %v179 = vunpack.c.l.b16 %v61
    %v180 = vunpack.c.l.b16 %v62
    %v181 = vpack.c.b16 %v166, %v165
    %v182 = vpack.c.b16 %v168, %v167
    %v183 = vpack.c.b16 %v170, %v169
    %v184 = vpack.c.b16 %v172, %v171
    %v185 = vpack.c.b16 %v174, %v173
    %v186 = vpack.c.b16 %v176, %v175
    %v187 = vpack.c.b16 %v178, %v177
    %v188 = vpack.c.b16 %v180, %v179
    %197 = vmatprep.subr.bf16.mxu0 0
    %198 = vmatpush1.bf16.msra.mxu0 %v181
    %199 = vmatprep.subr.bf16.mxu0 0
    %200 = vmatpush1.bf16.msra.mxu0 %v182
    %201 = vmatprep.subr.bf16.mxu0 0
    %202 = vmatpush1.bf16.msra.mxu0 %v183
    %203 = vmatprep.subr.bf16.mxu0 0
    %204 = vmatpush1.bf16.msra.mxu0 %v184
    %205 = vmatprep.subr.bf16.mxu0 0
    %206 = vmatpush1.bf16.msra.mxu0 %v185
    %207 = vmatprep.subr.bf16.mxu0 0
    %208 = vmatpush1.bf16.msra.mxu0 %v186
    %209 = vmatprep.subr.bf16.mxu0 0
    %210 = vmatpush1.bf16.msra.mxu0 %v187
    %211 = vmatprep.subr.bf16.mxu0 0
    %212 = vmatpush1.bf16.msra.mxu0 %v188
    %213 = vmatprep.subr.bf16.mxu0 0
    %214 = vmatpush1.bf16.msra.mxu0 0
    %215 = vmatprep.subr.bf16.mxu0 0
    %216 = vmatpush1.bf16.msra.mxu0 0
    %217 = vmatprep.subr.bf16.mxu0 0
    %218 = vmatpush1.bf16.msra.mxu0 0
    %219 = vmatprep.subr.bf16.mxu0 0
    %220 = vmatpush1.bf16.msra.mxu0 0
    %221 = vmatprep.subr.bf16.mxu0 0
    %222 = vmatpush1.bf16.msra.mxu0 0
    %223 = vmatprep.subr.bf16.mxu0 0
    %224 = vmatpush1.bf16.msra.mxu0 0
    %225 = vmatprep.subr.bf16.mxu0 0
    %226 = vmatpush1.bf16.msra.mxu0 0
    %227 = vmatprep.subr.bf16.mxu0 0
    %228 = vmatpush1.bf16.msra.mxu0 0
    %229 = vmatprep.mubr.bf16.mxu0 0
    %230 = vmatmul.mubr.bf16.gmra.mrb[0].mxu0 %v144
    %v231 = vpop.f32.mrb[0].mxu0
    %v232 = vadd.f32 %v148, %v231
    %v233 = vpop.f32.mrb[0].mxu0
    %v234 = vpop.f32.mrb[0].mxu0
    %v235 = vadd.f32 %v148, %v234
    %v236 = vpop.f32.mrb[0].mxu0
    %237 = vdwg.mxu0
    %v238 = vmax.f32 %v232, 0.0
    %v239 = vmax.f32 %v235, 0.0
    %v240 = vpack.c.bf16 %v239, %v238
    %v241 = vlaneseq
    %v242 = vshrl.u32 %v241, 7
    %v243 = vsub.s32 0, %v242
    %v244 = vrot.slane %v81, %v243
    %v261 = vunpack.c.l.b16 %v63
    %v262 = vunpack.c.l.b16 %v64
    %v263 = vunpack.c.l.b16 %v65
    %v264 = vunpack.c.l.b16 %v66
    %v265 = vunpack.c.l.b16 %v67
    %v266 = vunpack.c.l.b16 %v68
    %v267 = vunpack.c.l.b16 %v69
    %v268 = vunpack.c.l.b16 %v70
    %v269 = vunpack.c.l.b16 %v71
    %v270 = vunpack.c.l.b16 %v72
    %v271 = vunpack.c.l.b16 %v73
    %v272 = vunpack.c.l.b16 %v74
    %v273 = vunpack.c.l.b16 %v75
    %v274 = vunpack.c.l.b16 %v76
    %v275 = vunpack.c.l.b16 %v77
    %v276 = vunpack.c.l.b16 %v78
    %v277 = vpack.c.b16 %v262, %v261
    %v278 = vpack.c.b16 %v264, %v263
    %v279 = vpack.c.b16 %v266, %v265
    %v280 = vpack.c.b16 %v268, %v267
    %v281 = vpack.c.b16 %v270, %v269
    %v282 = vpack.c.b16 %v272, %v271
    %v283 = vpack.c.b16 %v274, %v273
    %v284 = vpack.c.b16 %v276, %v275
    %293 = vmatprep.subr.bf16.mxu0 0
    %294 = vmatpush1.bf16.msra.mxu0 %v277
    %295 = vmatprep.subr.bf16.mxu0 0
    %296 = vmatpush1.bf16.msra.mxu0 %v278
    %297 = vmatprep.subr.bf16.mxu0 0
    %298 = vmatpush1.bf16.msra.mxu0 %v279
    %299 = vmatprep.subr.bf16.mxu0 0
    %300 = vmatpush1.bf16.msra.mxu0 %v280
    %301 = vmatprep.subr.bf16.mxu0 0
    %302 = vmatpush1.bf16.msra.mxu0 %v281
    %303 = vmatprep.subr.bf16.mxu0 0
    %304 = vmatpush1.bf16.msra.mxu0 %v282
    %305 = vmatprep.subr.bf16.mxu0 0
    %306 = vmatpush1.bf16.msra.mxu0 %v283
    %307 = vmatprep.subr.bf16.mxu0 0
    %308 = vmatpush1.bf16.msra.mxu0 %v284
    %309 = vmatprep.subr.bf16.mxu0 0
    %310 = vmatpush1.bf16.msra.mxu0 0
    %311 = vmatprep.subr.bf16.mxu0 0
    %312 = vmatpush1.bf16.msra.mxu0 0
    %313 = vmatprep.subr.bf16.mxu0 0
    %314 = vmatpush1.bf16.msra.mxu0 0
    %315 = vmatprep.subr.bf16.mxu0 0
    %316 = vmatpush1.bf16.msra.mxu0 0
    %317 = vmatprep.subr.bf16.mxu0 0
    %318 = vmatpush1.bf16.msra.mxu0 0
    %319 = vmatprep.subr.bf16.mxu0 0
    %320 = vmatpush1.bf16.msra.mxu0 0
    %321 = vmatprep.subr.bf16.mxu0 0
    %322 = vmatpush1.bf16.msra.mxu0 0
    %323 = vmatprep.subr.bf16.mxu0 0
    %324 = vmatpush1.bf16.msra.mxu0 0
    %325 = vmatprep.mubr.bf16.mxu0 0
    %326 = vmatmul.mubr.bf16.gmra.mrb[0].mxu0 %v240
    %v327 = vpop.f32.mrb[0].mxu0
    %v328 = vadd.f32 %v244, %v327
    %v329 = vpop.f32.mrb[0].mxu0
    %v330 = vpop.f32.mrb[0].mxu0
    %v331 = vadd.f32 %v244, %v330
    %v332 = vpop.f32.mrb[0].mxu0
    %333 = vdwg.mxu0
    %vm334 = vcmask 31744
    %335 = vst.msk [vmem:[%s3] sm:$0xff] %vm334, %v328
    %336 = vst.msk [vmem:[%s3 + $0x8] sm:$0xff] %vm334, %v331
    // Predicated region
    $region22: #{simple_snake_dqn_forward.1} parent=1 // pred_check
      _
    $region23: #{simple_snake_dqn_forward.1} parent=1 // pred_check_branch
      %338 = sbr.rel (0) target = $region25
    $region24: #{simple_snake_dqn_forward.1} parent=1 // pred_region
      _
    $region25: #{simple_snake_dqn_forward.1} parent=1 // pred_fallthru
      _
    // Predicated region
    $region26: #{simple_snake_dqn_forward.1} parent=1 // pred_check
      _
    $region27: #{simple_snake_dqn_forward.1} parent=1 // pred_check_branch
      %340 = sbr.rel (0) target = $region29
    $region28: #{simple_snake_dqn_forward.1} parent=1 // pred_region
      _
    $region29: #{simple_snake_dqn_forward.1} parent=1 // pred_fallthru
      _
    %341 = vsyncpa [#allocation3], 1
    %342 = vsyncpa [#allocation5], 1

</llo_original>
